<compile_context>
chip_gen: v7x
topology: tpu7x:2x2x1
jax: 0.10.0
libtpu: 0.0.40
codegen_flags: <defaults>
</compile_context>

<pallas_src>
import math

import numpy as np
import jax
import jax.numpy as jnp
from jax.experimental import pallas as pl
from jax.experimental.pallas import tpu as pltpu


def _round_up(a: int, m: int) -> int:
    return (a + m - 1) // m * m


# -----------------------------------------------------------------------------
# Pallas kernel: fused |STFT| + per-batch-element (channel x time) reduction
# for one block of TB batch elements.
# -----------------------------------------------------------------------------
def _make_stft_sum_kernel(TB: int, R_pad: int, n_freq_pad: int):
    def kernel(frames_ref, dft_ref, out_ref):
        fr = frames_ref[...]                                    # (TB*R_pad, n_fft_pad) bf16
        # Single lane-dense MXU matmul: fused [cos | -sin] rectangular-window DFT.
        spec = jnp.dot(fr, dft_ref[...],
                       preferred_element_type=jnp.float32)      # (TB*R_pad, 2*n_freq_pad)
        re = spec[:, :n_freq_pad]                               # 128-aligned static slices
        im = spec[:, n_freq_pad:]
        mag = jnp.sqrt(re * re + im * im)                       # (TB*R_pad, n_freq_pad) f32

        # Per-batch-element sum over the concatenated (channel x time) rows
        # (zero-padded rows contribute 0).  The reshape only regroups sublane-major
        # dims (R_pad % 8 == 0, lane dim unchanged), so it is layout-preserving.
        mag3 = mag.reshape(TB, R_pad, n_freq_pad)
        out_ref[...] = jnp.sum(mag3, axis=1)                    # (TB, n_freq_pad)

    return kernel


# -----------------------------------------------------------------------------
# VMEM-aware batch-tile selection
# -----------------------------------------------------------------------------
def _choose_batch_tile(B, R_pad, n_fft_pad, n_freq_pad,
                       vmem_budget_bytes=20 * 1024 * 1024):
    per_row = (2 * R_pad * n_fft_pad * 2        # frames block, bf16, double-buffered
               + R_pad * 2 * n_freq_pad * 4     # spec (re|im) f32 intermediate
               + R_pad * n_freq_pad * 4         # |spec| f32 intermediate
               + 2 * n_freq_pad * 4)            # output rows, f32, double-buffered
    fixed = 2 * n_fft_pad * 2 * n_freq_pad * 2  # fused DFT matrix, bf16, double-buffered
    tb = max(1, int((vmem_budget_bytes - fixed) // per_row))
    # Keep the grid length >= 2 so both v7x TensorCores get a batch slice.
    tb = min(tb, max(1, -(-B // 2)))
    # Round the flattened matmul M (= tb * R_pad) down to a multiple of 128 rows
    # (full MXU row passes on v5e; v6e/v7x 256-row passes are a multiple of this).
    if tb * R_pad >= 128:
        step = 128 // math.gcd(128, R_pad)
        if tb >= step:
            tb = (tb // step) * step
    return int(tb)


# -----------------------------------------------------------------------------
# Factory: builds constants once, returns a jitted forward(x)
# -----------------------------------------------------------------------------
def make_biot_encoder(params, *, n_fft, hop_length, seq_len, n_channels,
                      n_channel_offset=0):
    """forward(x): x [batch, n_channels, seq_len] f32 -> embedding [batch, emb] f32."""
    n_freq = n_fft // 2 + 1
    emb = params["wp"].shape[1]
    n_frames = 1 + (seq_len - n_fft) // hop_length      # torch.stft(center=False)
    C = n_channels
    R = C * n_frames
    R_pad = _round_up(R, 16)                # bf16 packs 16 sublanes per vreg
    n_fft_pad = _round_up(n_fft, 128)       # lane multiple (matmul K)
    n_freq_pad = _round_up(n_freq, 128)     # lane multiple (per re / im half)

    # ---- constant operands, built exactly once (hoisted out of the call path) ----
    frame_idx = jnp.asarray(
        (np.arange(n_frames)[:, None] * hop_length
         + np.arange(n_fft)[None, :]).astype(np.int32))          # (n_frames, n_fft)

    # fused [cos | -sin] onesided DFT matrix (rectangular window), halves 128-padded
    n = np.arange(n_fft, dtype=np.int64)[:, None]
    k = np.arange(n_freq, dtype=np.int64)[None, :]
    ang = 2.0 * np.pi * ((n * k) % n_fft).astype(np.float64) / float(n_fft)
    dft_np = np.zeros((n_fft_pad, 2 * n_freq_pad), np.float32)
    dft_np[:n_fft, :n_freq] = np.cos(ang)
    dft_np[:n_fft, n_freq_pad:n_freq_pad + n_freq] = -np.sin(ang)
    dft = jnp.asarray(dft_np, dtype=jnp.bfloat16)    # bf16: half DMA/VMEM, full-rate MXU

    # projection weight zero-padded on the frequency axis (kept f32: it is applied
    # once per call in XLA, outside the kernel)
    wp_pad = jnp.zeros((n_freq_pad, emb), jnp.float32).at[:n_freq, :].set(params["wp"])

    # folded bias: bp + mean(channel tokens) + mean(positional encoding over frames)
    position = np.arange(n_frames, dtype=np.float64)[:, None]
    div_term = np.exp(np.arange(0, emb, 2, dtype=np.float64)
                      * (-math.log(10000.0) / emb))
    pe = np.zeros((n_frames, emb), np.float64)
    pe[:, 0::2] = np.sin(position * div_term)
    pe[:, 1::2] = np.cos(position * div_term)
    tok = params["channel_tokens"][n_channel_offset:n_channel_offset + C]
    bias_mean = (params["bp"]
                 + jnp.mean(tok, axis=0, keepdims=True)
                 + jnp.asarray(pe.mean(axis=0, keepdims=True), jnp.float32))  # (1, emb)

    inv_total = 1.0 / float(C * n_frames)

    def forward(x):
        B = x.shape[0]
        assert x.shape == (B, C, seq_len)

        TB = _choose_batch_tile(B, R_pad, n_fft_pad, n_freq_pad)
        B_pad = _round_up(B, TB)
        grid = B_pad // TB

        # ---- frame extraction (XLA glue; see TODO(synk) in the header) -----------
        frames = x.astype(jnp.bfloat16)[:, :, frame_idx]       # (B, C, n_frames, n_fft)
        frames = frames.reshape(B, R, n_fft)
        frames = jnp.pad(frames, ((0, B_pad - B), (0, R_pad - R),
                                  (0, n_fft_pad - n_fft)))
        frames = frames.reshape(grid, TB * R_pad, n_fft_pad)   # batch-major rows per block

        # ---- fused |STFT| + per-batch reduce kernel -------------------------------
        mag_sum = pl.pallas_call(
            _make_stft_sum_kernel(TB, R_pad, n_freq_pad),
            out_shape=jax.ShapeDtypeStruct((grid, TB, n_freq_pad), jnp.float32),
            grid_spec=pltpu.PrefetchScalarGridSpec(
                num_scalar_prefetch=0,
                grid=(grid,),
                in_specs=[
                    pl.BlockSpec((None, TB * R_pad, n_fft_pad), lambda g: (g, 0, 0)),
                    pl.BlockSpec((n_fft_pad, 2 * n_freq_pad), lambda g: (0, 0)),
                ],
                out_specs=pl.BlockSpec((None, TB, n_freq_pad), lambda g: (g, 0, 0)),
            ),
            compiler_params=pltpu.CompilerParams(
                dimension_semantics=("parallel",),      # batch blocks feed both v7x TCs
                vmem_limit_bytes=32 * 1024 * 1024,
            ),
            cost_estimate=pl.CostEstimate(
                flops=2 * B_pad * R_pad * n_fft_pad * (2 * n_freq_pad),
                transcendentals=B_pad * R_pad * n_freq_pad,
                bytes_accessed=(frames.size * 2 + dft.size * 2
                                + B_pad * n_freq_pad * 4),
            ),
        )(frames, dft)

        mag_sum = mag_sum.reshape(B_pad, n_freq_pad)[:B]        # (B, n_freq_pad)

        # ---- patch-embedding projection + folded bias (once per call, in XLA) -----
        # The mean over the concatenated (channel x time) sequence commutes with the
        # linear projection, so summing first (in-kernel) then projecting once is exact
        # while the xLSTM stack is identity.
        emb_out = (jnp.dot(mag_sum, wp_pad, precision=jax.lax.Precision.HIGHEST)
                   * inv_total + bias_mean)                     # (B, emb)
        return emb_out

    return jax.jit(forward)


def init_params(key, *, n_freq, emb, n_channels_model):
    """Deterministic synthetic parameters (shapes follow the PyTorch __init__)."""
    k1, k2, k3 = jax.random.split(key, 3)
    scale = 0.02
    return {
        # PatchFrequencyEmbedding.projection: Linear(n_freq, emb) (stored transposed)
        "wp": scale * jax.random.normal(k1, (n_freq, emb), jnp.float32),
        "bp": scale * jax.random.normal(k2, (1, emb), jnp.float32),
        # BIOTEncoder.channel_tokens: Embedding(n_channels, 256)
        "channel_tokens": scale * jax.random.normal(
            k3, (n_channels_model, emb), jnp.float32),
    }


if __name__ == "__main__":
    # Small shapes consistent with the module defaults:
    #   n_fft=200, hop_length=100 -> n_freq=101, n_frames = 1 + (T-200)//100 = 5
    #   emb_size=256 (hard-wired by channel_tokens Embedding(_, 256))
    B, C, T = 8, 4, 600
    n_fft, hop_length = 200, 100
    emb_size, n_channels_model = 256, 16

    key = jax.random.PRNGKey(0)
    kx, kp = jax.random.split(key)
    x = jax.random.normal(kx, (B, C, T), jnp.float32)

    params = init_params(kp, n_freq=n_fft // 2 + 1, emb=emb_size,
                         n_channels_model=n_channels_model)

    forward = make_biot_encoder(params, n_fft=n_fft, hop_length=hop_length,
                                seq_len=T, n_channels=C)
    emb_out = forward(x)
    jax.block_until_ready(emb_out)
    assert emb_out.shape == (B, emb_size)
    assert bool(jnp.all(jnp.isfinite(emb_out)))
    print("KERNEL_OK")
</pallas_src>

<mosaic_0001>
module attributes {stable_mosaic.version = 11 : i64} {
  func.func @kernel(%arg0: i32, %arg1: memref<1x128x256xbf16, #tpu.memory_space<vmem>>, %arg2: memref<256x256xbf16, #tpu.memory_space<vmem>>, %arg3: memref<1x4x128xf32, #tpu.memory_space<vmem>>) attributes {dimension_semantics = [#tpu.dimension_semantics<parallel>], iteration_bounds = array<i64: 2>, scalar_prefetch = 0 : i64, scratch_operands = 0 : i64, tpu.core_type = #tpu.core_type<tc>, window_params = [{transform_indices = @transform_0, window_bounds = array<i64: 1, 128, 256>}, {pipeline_mode = #tpu.pipeline_mode<synchronous>, transform_indices = @transform_1, window_bounds = array<i64: 256, 256>}, {transform_indices = @transform_2, window_bounds = array<i64: 1, 4, 128>}]} {
    %c0 = arith.constant 0 : index
    %c0_0 = arith.constant 0 : index
    %c0_1 = arith.constant 0 : index
    %0 = vector.load %arg1[%c0, %c0_0, %c0_1] : memref<1x128x256xbf16, #tpu.memory_space<vmem>>, vector<1x128x256xbf16>
    %1 = vector.shape_cast %0 : vector<1x128x256xbf16> to vector<128x256xbf16>
    %c0_2 = arith.constant 0 : index
    %c0_3 = arith.constant 0 : index
    %2 = vector.load %arg2[%c0_2, %c0_3] : memref<256x256xbf16, #tpu.memory_space<vmem>>, vector<256x256xbf16>
    %cst = arith.constant dense<0.000000e+00> : vector<128x256xf32>
    %3 = tpu.matmul %1, %2, %cst {dimension_numbers = #tpu.dot_dimension_numbers<[1], [0], [0], [1], [0, 0, 1, 1], [], []>} : vector<128x256xbf16>, vector<256x256xbf16>, vector<128x256xf32> -> vector<128x256xf32>
    %4 = vector.extract_strided_slice %3 {offsets = [0, 0], sizes = [128, 128], strides = [1, 1]} : vector<128x256xf32> to vector<128x128xf32>
    %5 = vector.extract_strided_slice %3 {offsets = [0, 128], sizes = [128, 128], strides = [1, 1]} : vector<128x256xf32> to vector<128x128xf32>
    %6 = arith.mulf %4, %4 : vector<128x128xf32>
    %7 = arith.mulf %5, %5 : vector<128x128xf32>
    %8 = arith.addf %6, %7 : vector<128x128xf32>
    %9 = math.sqrt %8 : vector<128x128xf32>
    %10 = vector.shape_cast %9 : vector<128x128xf32> to vector<4x32x128xf32>
    %cst_4 = arith.constant dense<0.000000e+00> : vector<4x128xf32>
    %11 = vector.multi_reduction <add>, %10, %cst_4 [1] : vector<4x32x128xf32> to vector<4x128xf32>
    %c0_5 = arith.constant 0 : index
    %c0_6 = arith.constant 0 : index
    %c0_7 = arith.constant 0 : index
    %12 = vector.load %arg3[%c0_5, %c0_6, %c0_7] : memref<1x4x128xf32, #tpu.memory_space<vmem>>, vector<1x4x128xf32>
    %13 = vector.shape_cast %12 : vector<1x4x128xf32> to vector<4x128xf32>
    %14 = vector.shape_cast %11 : vector<4x128xf32> to vector<1x4x128xf32>
    tpu.vector_store %arg3[%c0_5, %c0_6, %c0_7], %14 {strides = array<i32>} : memref<1x4x128xf32, #tpu.memory_space<vmem>>, vector<1x4x128xf32>,
    return
  }
  func.func @transform_0(%arg0: i32) -> (i32, i32, i32) {
    %c0_i32 = arith.constant 0 : i32
    %c0_i32_0 = arith.constant 0 : i32
    %c0_i32_1 = arith.constant 0 : i32
    return %arg0, %c0_i32, %c0_i32_0 : i32, i32, i32
  }
  func.func @transform_1(%arg0: i32) -> (i32, i32) {
    %c0_i32 = arith.constant 0 : i32
    %c0_i32_0 = arith.constant 0 : i32
    %c0_i32_1 = arith.constant 0 : i32
    return %c0_i32, %c0_i32_0 : i32, i32
  }
  func.func @transform_2(%arg0: i32) -> (i32, i32, i32) {
    %c0_i32 = arith.constant 0 : i32
    %c0_i32_0 = arith.constant 0 : i32
    %c0_i32_1 = arith.constant 0 : i32
    return %arg0, %c0_i32, %c0_i32_0 : i32, i32, i32
  }
}

</mosaic_0001>

<llo_original>
// kernel: forward.1
$region0: #{forward.1}
  #allocation0 [shape = 'u32[]', space=smem, size = 0x4, offset = 0x4, fixed_abs, tag = 'smem constant byte address 0x4 - core index']
  #allocation1 [shape = 'u32[144,128]{1,0:T(1,128)}', space=vmem, size = 0x12000, scoped, tag = 'internal scratch']
  %s0 = inlined_call_operand.vmem [shape: bf16[2,128,256], index: 0, kind: input, shape index: {}]
  %s1 = inlined_call_operand.vmem [shape: bf16[256,256], index: 1, kind: input, shape index: {}]
  %s2 = inlined_call_operand.vmem [shape: f32[2,4,128], index: 2, kind: output, shape index: {}]
  %s3 = sld [smem:[#allocation0]]
  $region41: #{forward.1} parent=0
    _
  %s5 = ssub.s32 1, %s3
  %s6 = scalar_select 0, %s5, %s3
  loop: start=0, step=1, limit=4
  $region2: #{forward.1} parent=0 // loop_pre_header
    _
  $region3: #{forward.1} parent=0 // loop_header
    %s8 = sphi 0, %s12
    %p9 = scmp.ge.s32.totalorder %s8, 4
    %s18 = sphi 0, %s20
    %s21 = sphi 0, %s18
    %s22 = sphi 0, %s21
    %s38 = sphi 0, %s22
    %s42 = sphi 0, %s42
    %s44 = sphi 0, %s42
    %s45 = sphi 0, %s44
    %s59 = sphi 0, %s45
    %s65 = sphi 0, %s67
    %s68 = sphi 0, %s65
    %s69 = sphi 0, %s68
    %s85 = sphi 0, %s69
  $region4: #{forward.1} parent=0 // loop_header_branch
    %11 = sbr.rel (%p9) target = $region8
  $region5: #{forward.1} parent=0 // loop_body
    %s13 = ssub.s32 %s8, 1
    %s14 = ssub.s32 %s8, 2
    %s15 = sadd.s32 %s8, 1
    %s16 = ssub.s32 %s8, %s15
    %p17 = scmp.eq.s32.totalorder %s16, 0
    %s19 = sadd.s32 %s18, 1
    %s20 = scalar_select %p17, %s18, %s19
    %p23 = pneg %p17
    %p24 = scmp.eq.s32.totalorder %s8, 1
    %p25 = por %p23, %p24
    %p26 = scmp.ne.s32.totalorder %s18, %s21
    %p27 = scmp.eq.s32.totalorder %s8, 0
    %p28 = por %p26, %p27
    %p29 = scmp.ne.s32.totalorder %s18, %s21
    %p30 = scmp.eq.s32.totalorder %s13, 1
    %p31 = por %p29, %p30
    %p32 = scmp.ne.s32.totalorder %s21, %s22
    %p33 = scmp.eq.s32.totalorder %s13, 0
    %p34 = por %p32, %p33
    %p35 = scmp.ne.s32.totalorder %s21, %s22
    %p36 = scmp.eq.s32.totalorder %s14, 1
    %p37 = por %p35, %p36
    %p39 = scmp.ne.s32.totalorder %s22, %s38
    %p40 = scmp.eq.s32.totalorder %s14, 0
    %p41 = por %p39, %p40
    %s43 = sadd.s32 %s42, 1
    %p46 = scmp.eq.s32.totalorder %s8, 1
    %p47 = scmp.ne.s32.totalorder %s42, %s44
    %p48 = scmp.eq.s32.totalorder %s8, 0
    %p49 = por %p47, %p48
    %p50 = scmp.ne.s32.totalorder %s42, %s44
    %p51 = scmp.eq.s32.totalorder %s13, 1
    %p52 = por %p50, %p51
    %p53 = scmp.ne.s32.totalorder %s44, %s45
    %p54 = scmp.eq.s32.totalorder %s13, 0
    %p55 = por %p53, %p54
    %p56 = scmp.ne.s32.totalorder %s44, %s45
    %p57 = scmp.eq.s32.totalorder %s14, 1
    %p58 = por %p56, %p57
    %p60 = scmp.ne.s32.totalorder %s45, %s59
    %p61 = scmp.eq.s32.totalorder %s14, 0
    %p62 = por %p60, %p61
    %s63 = ssub.s32 %s8, %s15
    %p64 = scmp.eq.s32.totalorder %s63, 0
    %s66 = sadd.s32 %s65, 1
    %s67 = scalar_select %p64, %s65, %s66
    %p70 = pneg %p64
    %p71 = scmp.eq.s32.totalorder %s8, 1
    %p72 = por %p70, %p71
    %p73 = scmp.ne.s32.totalorder %s65, %s68
    %p74 = scmp.eq.s32.totalorder %s8, 0
    %p75 = por %p73, %p74
    %p76 = scmp.ne.s32.totalorder %s65, %s68
    %p77 = scmp.eq.s32.totalorder %s13, 1
    %p78 = por %p76, %p77
    %p79 = scmp.ne.s32.totalorder %s68, %s69
    %p80 = scmp.eq.s32.totalorder %s13, 0
    %p81 = por %p79, %p80
    %p82 = scmp.ne.s32.totalorder %s68, %s69
    %p83 = scmp.eq.s32.totalorder %s14, 1
    %p84 = por %p82, %p83
    %p86 = scmp.ne.s32.totalorder %s69, %s85
    %p87 = scmp.eq.s32.totalorder %s14, 0
    %p88 = por %p86, %p87
    %p89 = scmp.le.s32.totalorder 1, %s8
    %p90 = scmp.lt.s32.totalorder %s8, 3
    %p91 = pnand %p89, %p90
    %p92 = pneg %p91
    // Predicated region
    $region9: #{forward.1} parent=5 // pred_check
      _
    $region10: #{forward.1} parent=5 // pred_check_branch
      %94 = sbr.rel (%p91) target = $region12
    $region11: #{forward.1} parent=5 // pred_region
      %s95 = ssub.s32 %s8, 1
      // Predicated region
      $region13: #{forward.1} parent=11 // pred_check
        %p96 = pneg %p55
      $region14: #{forward.1} parent=11 // pred_check_branch
        %98 = sbr.rel (%p96) target = $region16
      $region15: #{forward.1} parent=11 // pred_region
        _
      $region16: #{forward.1} parent=11 // pred_fallthru
        _
    $region12: #{forward.1} parent=5 // pred_fallthru
      _
    %p99 = scmp.lt.s32.totalorder %s8, 2
    // Predicated region
    $region17: #{forward.1} parent=5 // pred_check
      %p100 = pneg %p99
    $region18: #{forward.1} parent=5 // pred_check_branch
      %102 = sbr.rel (%p100) target = $region20
    $region19: #{forward.1} parent=5 // pred_region
      // Predicated region
      $region21: #{forward.1} parent=19 // pred_check
        %p103 = pneg %p28
      $region22: #{forward.1} parent=19 // pred_check_branch
        %105 = sbr.rel (%p103) target = $region24
      $region23: #{forward.1} parent=19 // pred_region
        %p106 = scmp.lt.s32.totalorder %s8, 1
        %s107 = scalar_select %p106, %s8, 1
        %s108 = smul.addr %s107, 32
        %s109 = smul.addr %s108, 4
        %s110 = scalar_lea.vmem %s0, %s109
      $region24: #{forward.1} parent=19 // pred_fallthru
        _
    $region20: #{forward.1} parent=5 // pred_fallthru
      _
    %p111 = scmp.le.s32.totalorder 1, %s8
    %p112 = scmp.lt.s32.totalorder %s8, 3
    %p113 = pnand %p111, %p112
    %p114 = pneg %p113
    // Predicated region
    $region25: #{forward.1} parent=5 // pred_check
      _
    $region26: #{forward.1} parent=5 // pred_check_branch
      %116 = sbr.rel (%p113) target = $region28
    $region27: #{forward.1} parent=5 // pred_region
      %s117 = ssub.s32 %s8, 1
      %p118 = scmp.lt.s32.totalorder %s13, 1
      %s119 = scalar_select %p118, %s13, 1
      %s120 = smul.addr %s119, 32
      %s121 = smul.addr %s120, 4
      %s122 = scalar_lea.vmem %s0, %s121
      %p123 = pneg %p34
      %p124 = pneg %p31
      %p125 = pneg %p55
      %p126 = pneg %p52
      %p127 = pneg %p81
      %p128 = pneg %p78
      %p129 = scmp.lt.s32.totalorder %s13, 1
      %s130 = scalar_select %p129, %s13, 1
      %s131 = smul.addr %s130, 4
      %s132 = scalar_lea.vmem %s2, %s131
      %p133 = scmp.lt.s32.totalorder %s13, 1
      %s134 = scalar_select %p133, %s13, 1
      %s135 = smul.addr %s134, 32
      %s136 = smul.addr %s135, 4
      %s137 = scalar_lea.vmem %s0, %s136
      %p138 = scmp.lt.s32.totalorder %s13, 1
      %s139 = scalar_select %p138, %s13, 1
      %s140 = smul.addr %s139, 4
      %s141 = scalar_lea.vmem %s2, %s140
      %v142 = vld [vmem:[%s137] sm:$0xff]
      %v143 = vld [vmem:[%s137 + $0x8] sm:$0xff]
      %v144 = vld [vmem:[%s137 + $0x10] sm:$0xff]
      %v145 = vld [vmem:[%s137 + $0x18] sm:$0xff]
      %v146 = vld [vmem:[%s137 + $0x20] sm:$0xff]
      %v147 = vld [vmem:[%s137 + $0x28] sm:$0xff]
      %v148 = vld [vmem:[%s137 + $0x30] sm:$0xff]
      %v149 = vld [vmem:[%s137 + $0x38] sm:$0xff]
      %v150 = vld [vmem:[%s137 + $0x40] sm:$0xff]
      %v151 = vld [vmem:[%s137 + $0x48] sm:$0xff]
      %v152 = vld [vmem:[%s137 + $0x50] sm:$0xff]
      %v153 = vld [vmem:[%s137 + $0x58] sm:$0xff]
      %v154 = vld [vmem:[%s137 + $0x60] sm:$0xff]
      %v155 = vld [vmem:[%s137 + $0x68] sm:$0xff]
      %v156 = vld [vmem:[%s137 + $0x70] sm:$0xff]
      %v157 = vld [vmem:[%s137 + $0x78] sm:$0xff]
      %v158 = vld [vmem:[%s1] sm:$0xff]
      %v159 = vld [vmem:[%s1 + $0x8] sm:$0xff]
      %v160 = vld [vmem:[%s1 + $0x10] sm:$0xff]
      %v161 = vld [vmem:[%s1 + $0x18] sm:$0xff]
      %v162 = vld [vmem:[%s1 + $0x20] sm:$0xff]
      %v163 = vld [vmem:[%s1 + $0x28] sm:$0xff]
      %v164 = vld [vmem:[%s1 + $0x30] sm:$0xff]
      %v165 = vld [vmem:[%s1 + $0x38] sm:$0xff]
      %v166 = vld [vmem:[%s1 + $0x40] sm:$0xff]
      %v167 = vld [vmem:[%s1 + $0x48] sm:$0xff]
      %v168 = vld [vmem:[%s1 + $0x50] sm:$0xff]
      %v169 = vld [vmem:[%s1 + $0x58] sm:$0xff]
      %v170 = vld [vmem:[%s1 + $0x60] sm:$0xff]
      %v171 = vld [vmem:[%s1 + $0x68] sm:$0xff]
      %v172 = vld [vmem:[%s1 + $0x70] sm:$0xff]
      %v173 = vld [vmem:[%s1 + $0x78] sm:$0xff]
      %v174 = vld [vmem:[%s1 + $0x80] sm:$0xff]
      %v175 = vld [vmem:[%s1 + $0x88] sm:$0xff]
      %v176 = vld [vmem:[%s1 + $0x90] sm:$0xff]
      %v177 = vld [vmem:[%s1 + $0x98] sm:$0xff]
      %v178 = vld [vmem:[%s1 + $0xa0] sm:$0xff]
      %v179 = vld [vmem:[%s1 + $0xa8] sm:$0xff]
      %v180 = vld [vmem:[%s1 + $0xb0] sm:$0xff]
      %v181 = vld [vmem:[%s1 + $0xb8] sm:$0xff]
      %v182 = vld [vmem:[%s1 + $0xc0] sm:$0xff]
      %v183 = vld [vmem:[%s1 + $0xc8] sm:$0xff]
      %v184 = vld [vmem:[%s1 + $0xd0] sm:$0xff]
      %v185 = vld [vmem:[%s1 + $0xd8] sm:$0xff]
      %v186 = vld [vmem:[%s1 + $0xe0] sm:$0xff]
      %v187 = vld [vmem:[%s1 + $0xe8] sm:$0xff]
      %v188 = vld [vmem:[%s1 + $0xf0] sm:$0xff]
      %v189 = vld [vmem:[%s1 + $0xf8] sm:$0xff]
      %v206 = vunpack.c.l.b16 %v142
      %v207 = vunpack.c.h.b16 %v142
      %v208 = vunpack.c.l.b16 %v143
      %v209 = vunpack.c.h.b16 %v143
      %v210 = vunpack.c.l.b16 %v144
      %v211 = vunpack.c.h.b16 %v144
      %v212 = vunpack.c.l.b16 %v145
      %v213 = vunpack.c.h.b16 %v145
      %v214 = vunpack.c.l.b16 %v146
      %v215 = vunpack.c.h.b16 %v146
      %v216 = vunpack.c.l.b16 %v147
      %v217 = vunpack.c.h.b16 %v147
      %v218 = vunpack.c.l.b16 %v148
      %v219 = vunpack.c.h.b16 %v148
      %v220 = vunpack.c.l.b16 %v149
      %v221 = vunpack.c.h.b16 %v149
      %v222 = vunpack.c.l.b16 %v150
      %v223 = vunpack.c.h.b16 %v150
      %v224 = vunpack.c.l.b16 %v151
      %v225 = vunpack.c.h.b16 %v151
      %v226 = vunpack.c.l.b16 %v152
      %v227 = vunpack.c.h.b16 %v152
      %v228 = vunpack.c.l.b16 %v153
      %v229 = vunpack.c.h.b16 %v153
      %v230 = vunpack.c.l.b16 %v154
      %v231 = vunpack.c.h.b16 %v154
      %v232 = vunpack.c.l.b16 %v155
      %v233 = vunpack.c.h.b16 %v155
      %v234 = vunpack.c.l.b16 %v156
      %v235 = vunpack.c.h.b16 %v156
      %v236 = vunpack.c.l.b16 %v157
      %v237 = vunpack.c.h.b16 %v157
      %v238 = vpack.c.b16 %v208, %v206
      %v239 = vpack.c.b16 %v209, %v207
      %v240 = vpack.c.b16 %v212, %v210
      %v241 = vpack.c.b16 %v213, %v211
      %v242 = vpack.c.b16 %v216, %v214
      %v243 = vpack.c.b16 %v217, %v215
      %v244 = vpack.c.b16 %v220, %v218
      %v245 = vpack.c.b16 %v221, %v219
      %v246 = vpack.c.b16 %v224, %v222
      %v247 = vpack.c.b16 %v225, %v223
      %v248 = vpack.c.b16 %v228, %v226
      %v249 = vpack.c.b16 %v229, %v227
      %v250 = vpack.c.b16 %v232, %v230
      %v251 = vpack.c.b16 %v233, %v231
      %v252 = vpack.c.b16 %v236, %v234
      %v253 = vpack.c.b16 %v237, %v235
      %v302 = vunpack.c.l.b16 %v158
      %v303 = vunpack.c.h.b16 %v158
      %v304 = vunpack.c.l.b16 %v159
      %v305 = vunpack.c.h.b16 %v159
      %v306 = vunpack.c.l.b16 %v160
      %v307 = vunpack.c.h.b16 %v160
      %v308 = vunpack.c.l.b16 %v161
      %v309 = vunpack.c.h.b16 %v161
      %v310 = vunpack.c.l.b16 %v162
      %v311 = vunpack.c.h.b16 %v162
      %v312 = vunpack.c.l.b16 %v163
      %v313 = vunpack.c.h.b16 %v163
      %v314 = vunpack.c.l.b16 %v164
      %v315 = vunpack.c.h.b16 %v164
      %v316 = vunpack.c.l.b16 %v165
      %v317 = vunpack.c.h.b16 %v165
      %v318 = vunpack.c.l.b16 %v166
      %v319 = vunpack.c.h.b16 %v166
      %v320 = vunpack.c.l.b16 %v167
      %v321 = vunpack.c.h.b16 %v167
      %v322 = vunpack.c.l.b16 %v168
      %v323 = vunpack.c.h.b16 %v168
      %v324 = vunpack.c.l.b16 %v169
      %v325 = vunpack.c.h.b16 %v169
      %v326 = vunpack.c.l.b16 %v170
      %v327 = vunpack.c.h.b16 %v170
      %v328 = vunpack.c.l.b16 %v171
      %v329 = vunpack.c.h.b16 %v171
      %v330 = vunpack.c.l.b16 %v172
      %v331 = vunpack.c.h.b16 %v172
      %v332 = vunpack.c.l.b16 %v173
      %v333 = vunpack.c.h.b16 %v173
      %v334 = vunpack.c.l.b16 %v174
      %v335 = vunpack.c.h.b16 %v174
      %v336 = vunpack.c.l.b16 %v175
      %v337 = vunpack.c.h.b16 %v175
      %v338 = vunpack.c.l.b16 %v176
      %v339 = vunpack.c.h.b16 %v176
      %v340 = vunpack.c.l.b16 %v177
      %v341 = vunpack.c.h.b16 %v177
      %v342 = vunpack.c.l.b16 %v178
      %v343 = vunpack.c.h.b16 %v178
      %v344 = vunpack.c.l.b16 %v179
      %v345 = vunpack.c.h.b16 %v179
      %v346 = vunpack.c.l.b16 %v180
      %v347 = vunpack.c.h.b16 %v180
      %v348 = vunpack.c.l.b16 %v181
      %v349 = vunpack.c.h.b16 %v181
      %v350 = vunpack.c.l.b16 %v182
      %v351 = vunpack.c.h.b16 %v182
      %v352 = vunpack.c.l.b16 %v183
      %v353 = vunpack.c.h.b16 %v183
      %v354 = vunpack.c.l.b16 %v184
      %v355 = vunpack.c.h.b16 %v184
      %v356 = vunpack.c.l.b16 %v185
      %v357 = vunpack.c.h.b16 %v185
      %v358 = vunpack.c.l.b16 %v186
      %v359 = vunpack.c.h.b16 %v186
      %v360 = vunpack.c.l.b16 %v187
      %v361 = vunpack.c.h.b16 %v187
      %v362 = vunpack.c.l.b16 %v188
      %v363 = vunpack.c.h.b16 %v188
      %v364 = vunpack.c.l.b16 %v189
      %v365 = vunpack.c.h.b16 %v189
      %v366 = vpack.c.b16 %v304, %v302
      %v367 = vpack.c.b16 %v305, %v303
      %v368 = vpack.c.b16 %v308, %v306
      %v369 = vpack.c.b16 %v309, %v307
      %v370 = vpack.c.b16 %v312, %v310
      %v371 = vpack.c.b16 %v313, %v311
      %v372 = vpack.c.b16 %v316, %v314
      %v373 = vpack.c.b16 %v317, %v315
      %v374 = vpack.c.b16 %v320, %v318
      %v375 = vpack.c.b16 %v321, %v319
      %v376 = vpack.c.b16 %v324, %v322
      %v377 = vpack.c.b16 %v325, %v323
      %v378 = vpack.c.b16 %v328, %v326
      %v379 = vpack.c.b16 %v329, %v327
      %v380 = vpack.c.b16 %v332, %v330
      %v381 = vpack.c.b16 %v333, %v331
      %v382 = vpack.c.b16 %v336, %v334
      %v383 = vpack.c.b16 %v337, %v335
      %v384 = vpack.c.b16 %v340, %v338
      %v385 = vpack.c.b16 %v341, %v339
      %v386 = vpack.c.b16 %v344, %v342
      %v387 = vpack.c.b16 %v345, %v343
      %v388 = vpack.c.b16 %v348, %v346
      %v389 = vpack.c.b16 %v349, %v347
      %v390 = vpack.c.b16 %v352, %v350
      %v391 = vpack.c.b16 %v353, %v351
      %v392 = vpack.c.b16 %v356, %v354
      %v393 = vpack.c.b16 %v357, %v355
      %v394 = vpack.c.b16 %v360, %v358
      %v395 = vpack.c.b16 %v361, %v359
      %v396 = vpack.c.b16 %v364, %v362
      %v397 = vpack.c.b16 %v365, %v363
      %430 = vmatprep.subr.bf16.mxu0 %v367
      %431 = vmatpush1.bf16.msra.mxu0 %v366
      %432 = vmatprep.subr.bf16.mxu0 %v369
      %433 = vmatpush1.bf16.msra.mxu0 %v368
      %434 = vmatprep.subr.bf16.mxu0 %v371
      %435 = vmatpush1.bf16.msra.mxu0 %v370
      %436 = vmatprep.subr.bf16.mxu0 %v373
      %437 = vmatpush1.bf16.msra.mxu0 %v372
      %438 = vmatprep.subr.bf16.mxu0 %v375
      %439 = vmatpush1.bf16.msra.mxu0 %v374
      %440 = vmatprep.subr.bf16.mxu0 %v377
      %441 = vmatpush1.bf16.msra.mxu0 %v376
      %442 = vmatprep.subr.bf16.mxu0 %v379
      %443 = vmatpush1.bf16.msra.mxu0 %v378
      %444 = vmatprep.subr.bf16.mxu0 %v381
      %445 = vmatpush1.bf16.msra.mxu0 %v380
      %446 = vmatprep.subr.bf16.mxu0 %v383
      %447 = vmatpush1.bf16.msra.mxu0 %v382
      %448 = vmatprep.subr.bf16.mxu0 %v385
      %449 = vmatpush1.bf16.msra.mxu0 %v384
      %450 = vmatprep.subr.bf16.mxu0 %v387
      %451 = vmatpush1.bf16.msra.mxu0 %v386
      %452 = vmatprep.subr.bf16.mxu0 %v389
      %453 = vmatpush1.bf16.msra.mxu0 %v388
      %454 = vmatprep.subr.bf16.mxu0 %v391
      %455 = vmatpush1.bf16.msra.mxu0 %v390
      %456 = vmatprep.subr.bf16.mxu0 %v393
      %457 = vmatpush1.bf16.msra.mxu0 %v392
      %458 = vmatprep.subr.bf16.mxu0 %v395
      %459 = vmatpush1.bf16.msra.mxu0 %v394
      %460 = vmatprep.subr.bf16.mxu0 %v397
      %461 = vmatpush1.bf16.msra.mxu0 %v396
      %462 = vmatprep.mubr.bf16.mxu0 %v239
      %463 = vmatmul.mubr.bf16.gmra.mrb[0].mxu0 %v238
      %v464 = vpop.f32.mrb[0].mxu0
      %v465 = vadd.f32 0.0, %v464
      %v466 = vpop.f32.mrb[0].mxu0
      %v467 = vadd.f32 0.0, %v466
      %v468 = vpop.f32.mrb[0].mxu0
      %v469 = vadd.f32 0.0, %v468
      %v470 = vpop.f32.mrb[0].mxu0
      %v471 = vadd.f32 0.0, %v470
      %472 = vmatprep.mubr.bf16.mxu0 %v241
      %473 = vmatmul.mubr.bf16.gmra.mrb[0].mxu0 %v240
      %v474 = vpop.f32.mrb[0].mxu0
      %v475 = vadd.f32 0.0, %v474
      %v476 = vpop.f32.mrb[0].mxu0
      %v477 = vadd.f32 0.0, %v476
      %v478 = vpop.f32.mrb[0].mxu0
      %v479 = vadd.f32 0.0, %v478
      %v480 = vpop.f32.mrb[0].mxu0
      %v481 = vadd.f32 0.0, %v480
      %482 = vmatprep.mubr.bf16.mxu0 %v243
      %483 = vmatmul.mubr.bf16.gmra.mrb[0].mxu0 %v242
      %v484 = vpop.f32.mrb[0].mxu0
      %v485 = vadd.f32 0.0, %v484
      %v486 = vpop.f32.mrb[0].mxu0
      %v487 = vadd.f32 0.0, %v486
      %v488 = vpop.f32.mrb[0].mxu0
      %v489 = vadd.f32 0.0, %v488
      %v490 = vpop.f32.mrb[0].mxu0
      %v491 = vadd.f32 0.0, %v490
      %492 = vmatprep.mubr.bf16.mxu0 %v245
      %493 = vmatmul.mubr.bf16.gmra.mrb[0].mxu0 %v244
      %v494 = vpop.f32.mrb[0].mxu0
      %v495 = vadd.f32 0.0, %v494
      %v496 = vpop.f32.mrb[0].mxu0
      %v497 = vadd.f32 0.0, %v496
      %v498 = vpop.f32.mrb[0].mxu0
      %v499 = vadd.f32 0.0, %v498
      %v500 = vpop.f32.mrb[0].mxu0
      %v501 = vadd.f32 0.0, %v500
      %502 = vmatprep.mubr.bf16.mxu0 %v247
      %503 = vmatmul.mubr.bf16.gmra.mrb[0].mxu0 %v246
      %v504 = vpop.f32.mrb[0].mxu0
      %v505 = vadd.f32 0.0, %v504
      %v506 = vpop.f32.mrb[0].mxu0
      %v507 = vadd.f32 0.0, %v506
      %v508 = vpop.f32.mrb[0].mxu0
      %v509 = vadd.f32 0.0, %v508
      %v510 = vpop.f32.mrb[0].mxu0
      %v511 = vadd.f32 0.0, %v510
      %512 = vmatprep.mubr.bf16.mxu0 %v249
      %513 = vmatmul.mubr.bf16.gmra.mrb[0].mxu0 %v248
      %v514 = vpop.f32.mrb[0].mxu0
      %v515 = vadd.f32 0.0, %v514
      %v516 = vpop.f32.mrb[0].mxu0
      %v517 = vadd.f32 0.0, %v516
      %v518 = vpop.f32.mrb[0].mxu0
      %v519 = vadd.f32 0.0, %v518
      %v520 = vpop.f32.mrb[0].mxu0
      %v521 = vadd.f32 0.0, %v520
      %522 = vmatprep.mubr.bf16.mxu0 %v251
      %523 = vmatmul.mubr.bf16.gmra.mrb[0].mxu0 %v250
      %v524 = vpop.f32.mrb[0].mxu0
      %v525 = vadd.f32 0.0, %v524
      %v526 = vpop.f32.mrb[0].mxu0
      %v527 = vadd.f32 0.0, %v526
      %v528 = vpop.f32.mrb[0].mxu0
      %v529 = vadd.f32 0.0, %v528
      %v530 = vpop.f32.mrb[0].mxu0
      %v531 = vadd.f32 0.0, %v530
      %532 = vmatprep.mubr.bf16.mxu0 %v253
      %533 = vmatmul.mubr.bf16.gmra.mrb[0].mxu0 %v252
      %v534 = vpop.f32.mrb[0].mxu0
      %v535 = vadd.f32 0.0, %v534
      %v536 = vpop.f32.mrb[0].mxu0
      %v537 = vadd.f32 0.0, %v536
      %v538 = vpop.f32.mrb[0].mxu0
      %v539 = vadd.f32 0.0, %v538
      %v540 = vpop.f32.mrb[0].mxu0
      %v541 = vadd.f32 0.0, %v540
      %542 = vdwg.mxu0
      %v543 = vmul.f32 %v465, %v465
      %v544 = vmul.f32 %v469, %v469
      %v545 = vmul.f32 %v475, %v475
      %v546 = vmul.f32 %v479, %v479
      %v547 = vmul.f32 %v485, %v485
      %v548 = vmul.f32 %v489, %v489
      %v549 = vmul.f32 %v495, %v495
      %v550 = vmul.f32 %v499, %v499
      %v551 = vmul.f32 %v505, %v505
      %v552 = vmul.f32 %v509, %v509
      %v553 = vmul.f32 %v515, %v515
      %v554 = vmul.f32 %v519, %v519
      %v555 = vmul.f32 %v525, %v525
      %v556 = vmul.f32 %v529, %v529
      %v557 = vmul.f32 %v535, %v535
      %v558 = vmul.f32 %v539, %v539
      %v559 = vmul.f32 %v467, %v467
      %v560 = vmul.f32 %v471, %v471
      %v561 = vmul.f32 %v477, %v477
      %v562 = vmul.f32 %v481, %v481
      %v563 = vmul.f32 %v487, %v487
      %v564 = vmul.f32 %v491, %v491
      %v565 = vmul.f32 %v497, %v497
      %v566 = vmul.f32 %v501, %v501
      %v567 = vmul.f32 %v507, %v507
      %v568 = vmul.f32 %v511, %v511
      %v569 = vmul.f32 %v517, %v517
      %v570 = vmul.f32 %v521, %v521
      %v571 = vmul.f32 %v527, %v527
      %v572 = vmul.f32 %v531, %v531
      %v573 = vmul.f32 %v537, %v537
      %v574 = vmul.f32 %v541, %v541
      %v575 = vadd.f32 %v543, %v559
      %v576 = vadd.f32 %v544, %v560
      %v577 = vadd.f32 %v545, %v561
      %v578 = vadd.f32 %v546, %v562
      %v579 = vadd.f32 %v547, %v563
      %v580 = vadd.f32 %v548, %v564
      %v581 = vadd.f32 %v549, %v565
      %v582 = vadd.f32 %v550, %v566
      %v583 = vadd.f32 %v551, %v567
      %v584 = vadd.f32 %v552, %v568
      %v585 = vadd.f32 %v553, %v569
      %v586 = vadd.f32 %v554, %v570
      %v587 = vadd.f32 %v555, %v571
      %v588 = vadd.f32 %v556, %v572
      %v589 = vadd.f32 %v557, %v573
      %v590 = vadd.f32 %v558, %v574
      %v591 = vrsqrt.pop %v575
      %v592 = vmul.f32 %v575, %v591
      %vm593 = vcmp.eq.f32.partialorder %v575, inf
      %v594 = vsel %vm593, %v575, %v592
      %vm595 = vcmp.eq.f32.partialorder %v575, 0.0
      %v596 = vand.u32 %v575, 2147483648
      %v597 = vsel %vm595, %v596, %v594
      %v598 = vrsqrt.pop %v576
      %v599 = vmul.f32 %v576, %v598
      %vm600 = vcmp.eq.f32.partialorder %v576, inf
      %v601 = vsel %vm600, %v576, %v599
      %vm602 = vcmp.eq.f32.partialorder %v576, 0.0
      %v603 = vand.u32 %v576, 2147483648
      %v604 = vsel %vm602, %v603, %v601
      %v605 = vrsqrt.pop %v577
      %v606 = vmul.f32 %v577, %v605
      %vm607 = vcmp.eq.f32.partialorder %v577, inf
      %v608 = vsel %vm607, %v577, %v606
      %vm609 = vcmp.eq.f32.partialorder %v577, 0.0
      %v610 = vand.u32 %v577, 2147483648
      %v611 = vsel %vm609, %v610, %v608
      %v612 = vrsqrt.pop %v578
      %v613 = vmul.f32 %v578, %v612
      %vm614 = vcmp.eq.f32.partialorder %v578, inf
      %v615 = vsel %vm614, %v578, %v613
      %vm616 = vcmp.eq.f32.partialorder %v578, 0.0
      %v617 = vand.u32 %v578, 2147483648
      %v618 = vsel %vm616, %v617, %v615
      %v619 = vrsqrt.pop %v579
      %v620 = vmul.f32 %v579, %v619
      %vm621 = vcmp.eq.f32.partialorder %v579, inf
      %v622 = vsel %vm621, %v579, %v620
      %vm623 = vcmp.eq.f32.partialorder %v579, 0.0
      %v624 = vand.u32 %v579, 2147483648
      %v625 = vsel %vm623, %v624, %v622
      %v626 = vrsqrt.pop %v580
      %v627 = vmul.f32 %v580, %v626
      %vm628 = vcmp.eq.f32.partialorder %v580, inf
      %v629 = vsel %vm628, %v580, %v627
      %vm630 = vcmp.eq.f32.partialorder %v580, 0.0
      %v631 = vand.u32 %v580, 2147483648
      %v632 = vsel %vm630, %v631, %v629
      %v633 = vrsqrt.pop %v581
      %v634 = vmul.f32 %v581, %v633
      %vm635 = vcmp.eq.f32.partialorder %v581, inf
      %v636 = vsel %vm635, %v581, %v634
      %vm637 = vcmp.eq.f32.partialorder %v581, 0.0
      %v638 = vand.u32 %v581, 2147483648
      %v639 = vsel %vm637, %v638, %v636
      %v640 = vrsqrt.pop %v582
      %v641 = vmul.f32 %v582, %v640
      %vm642 = vcmp.eq.f32.partialorder %v582, inf
      %v643 = vsel %vm642, %v582, %v641
      %vm644 = vcmp.eq.f32.partialorder %v582, 0.0
      %v645 = vand.u32 %v582, 2147483648
      %v646 = vsel %vm644, %v645, %v643
      %v647 = vrsqrt.pop %v583
      %v648 = vmul.f32 %v583, %v647
      %vm649 = vcmp.eq.f32.partialorder %v583, inf
      %v650 = vsel %vm649, %v583, %v648
      %vm651 = vcmp.eq.f32.partialorder %v583, 0.0
      %v652 = vand.u32 %v583, 2147483648
      %v653 = vsel %vm651, %v652, %v650
      %v654 = vrsqrt.pop %v584
      %v655 = vmul.f32 %v584, %v654
      %vm656 = vcmp.eq.f32.partialorder %v584, inf
      %v657 = vsel %vm656, %v584, %v655
      %vm658 = vcmp.eq.f32.partialorder %v584, 0.0
      %v659 = vand.u32 %v584, 2147483648
      %v660 = vsel %vm658, %v659, %v657
      %v661 = vrsqrt.pop %v585
      %v662 = vmul.f32 %v585, %v661
      %vm663 = vcmp.eq.f32.partialorder %v585, inf
      %v664 = vsel %vm663, %v585, %v662
      %vm665 = vcmp.eq.f32.partialorder %v585, 0.0
      %v666 = vand.u32 %v585, 2147483648
      %v667 = vsel %vm665, %v666, %v664
      %v668 = vrsqrt.pop %v586
      %v669 = vmul.f32 %v586, %v668
      %vm670 = vcmp.eq.f32.partialorder %v586, inf
      %v671 = vsel %vm670, %v586, %v669
      %vm672 = vcmp.eq.f32.partialorder %v586, 0.0
      %v673 = vand.u32 %v586, 2147483648
      %v674 = vsel %vm672, %v673, %v671
      %v675 = vrsqrt.pop %v587
      %v676 = vmul.f32 %v587, %v675
      %vm677 = vcmp.eq.f32.partialorder %v587, inf
      %v678 = vsel %vm677, %v587, %v676
      %vm679 = vcmp.eq.f32.partialorder %v587, 0.0
      %v680 = vand.u32 %v587, 2147483648
      %v681 = vsel %vm679, %v680, %v678
      %v682 = vrsqrt.pop %v588
      %v683 = vmul.f32 %v588, %v682
      %vm684 = vcmp.eq.f32.partialorder %v588, inf
      %v685 = vsel %vm684, %v588, %v683
      %vm686 = vcmp.eq.f32.partialorder %v588, 0.0
      %v687 = vand.u32 %v588, 2147483648
      %v688 = vsel %vm686, %v687, %v685
      %v689 = vrsqrt.pop %v589
      %v690 = vmul.f32 %v589, %v689
      %vm691 = vcmp.eq.f32.partialorder %v589, inf
      %v692 = vsel %vm691, %v589, %v690
      %vm693 = vcmp.eq.f32.partialorder %v589, 0.0
      %v694 = vand.u32 %v589, 2147483648
      %v695 = vsel %vm693, %v694, %v692
      %v696 = vrsqrt.pop %v590
      %v697 = vmul.f32 %v590, %v696
      %vm698 = vcmp.eq.f32.partialorder %v590, inf
      %v699 = vsel %vm698, %v590, %v697
      %vm700 = vcmp.eq.f32.partialorder %v590, 0.0
      %v701 = vand.u32 %v590, 2147483648
      %v702 = vsel %vm700, %v701, %v699
      %v703 = vadd.f32 %v597, %v604
      %v704 = vadd.f32 %v703, %v611
      %v705 = vadd.f32 %v704, %v618
      %v706 = vrot.slane %v705, 4
      %v707 = vadd.f32 %v705, %v706
      %v708 = vrot.slane %v707, 2
      %v709 = vadd.f32 %v707, %v708
      %v710 = vrot.slane %v709, 1
      %v711 = vadd.f32 %v709, %v710
      %v712 = vadd.f32 %v625, %v632
      %v713 = vadd.f32 %v712, %v639
      %v714 = vadd.f32 %v713, %v646
      %v715 = vrot.slane %v714, 4
      %v716 = vadd.f32 %v714, %v715
      %v717 = vrot.slane %v716, 2
      %v718 = vadd.f32 %v716, %v717
      %v719 = vrot.slane %v718, 1
      %v720 = vadd.f32 %v718, %v719
      %v721 = vadd.f32 %v653, %v660
      %v722 = vadd.f32 %v721, %v667
      %v723 = vadd.f32 %v722, %v674
      %v724 = vrot.slane %v723, 4
      %v725 = vadd.f32 %v723, %v724
      %v726 = vrot.slane %v725, 2
      %v727 = vadd.f32 %v725, %v726
      %v728 = vrot.slane %v727, 1
      %v729 = vadd.f32 %v727, %v728
      %v730 = vadd.f32 %v681, %v688
      %v731 = vadd.f32 %v730, %v695
      %v732 = vadd.f32 %v731, %v702
      %v733 = vrot.slane %v732, 4
      %v734 = vadd.f32 %v732, %v733
      %v735 = vrot.slane %v734, 2
      %v736 = vadd.f32 %v734, %v735
      %v737 = vrot.slane %v736, 1
      %v738 = vadd.f32 %v736, %v737
      %vm743 = vcmask 1041409
      %v744 = vsel %vm743, %v720, %v711
      %vm745 = vcmask 1042434
      %v746 = vsel %vm745, %v729, %v744
      %vm747 = vcmask 1043459
      %v748 = vsel %vm747, %v738, %v746
      %750 = vst [vmem:[%s141] sm:$0xf] %v748
      %p751 = scmp.lt.s32.totalorder %s13, 1
      %s752 = scalar_select %p751, %s13, 1
      %s753 = smul.addr %s752, 4
      %s754 = scalar_lea.vmem %s2, %s753
      // Predicated region
      $region29: #{forward.1} parent=27 // pred_check
        %p755 = pneg %p78
      $region30: #{forward.1} parent=27 // pred_check_branch
        %757 = sbr.rel (%p755) target = $region32
      $region31: #{forward.1} parent=27 // pred_region
        _
      $region32: #{forward.1} parent=27 // pred_fallthru
        _
    $region28: #{forward.1} parent=5 // pred_fallthru
      _
    %p758 = scmp.le.s32.totalorder 2, %s8
    // Predicated region
    $region33: #{forward.1} parent=5 // pred_check
      %p759 = pneg %p758
    $region34: #{forward.1} parent=5 // pred_check_branch
      %761 = sbr.rel (%p759) target = $region36
    $region35: #{forward.1} parent=5 // pred_region
      %s762 = ssub.s32 %s8, 2
      // Predicated region
      $region37: #{forward.1} parent=35 // pred_check
        %p763 = pneg %p84
      $region38: #{forward.1} parent=35 // pred_check_branch
        %765 = sbr.rel (%p763) target = $region40
      $region39: #{forward.1} parent=35 // pred_region
        %p766 = scmp.lt.s32.totalorder %s14, 1
        %s767 = scalar_select %p766, %s14, 1
        %s768 = smul.addr %s767, 4
        %s769 = scalar_lea.vmem %s2, %s768
      $region40: #{forward.1} parent=35 // pred_fallthru
        _
    $region36: #{forward.1} parent=5 // pred_fallthru
      _
  $region6: #{forward.1} parent=0 // loop_footer
    %s12 = sadd.s32 1, %s8
  $region7: #{forward.1} parent=0 // loop_footer_branch
    %7 = sbr.rel target = $region3
  $region8: #{forward.1} parent=0 // loop_exit
    _

</llo_original>
